<compile_context>
chip_gen: v7x
topology: tpu7x:2x2x1
jax: 0.10.0
libtpu: 0.0.40
codegen_flags: <defaults>
</compile_context>

<pallas_src>
import jax
import jax.numpy as jnp
from jax.experimental import pallas as pl
from jax.experimental.pallas import tpu as pltpu


def _concat_dma_kernel(x_hbm, y_hbm, o_hbm, sem):
    """Grid step i copies row i of x and row i of y straight from HBM into the
    two contiguous halves of output row i (HBM->HBM DMA, double-buffered)."""
    i = pl.program_id(0)
    n_rows = pl.num_programs(0)
    lx = x_hbm.shape[1]
    ly = y_hbm.shape[1]

    def copies(row, slot):
        row_sl = pl.ds(row, 1)
        cx = pltpu.make_async_copy(
            x_hbm.at[row_sl, :],
            o_hbm.at[row_sl, pl.ds(0, lx)],
            sem.at[slot, 0],
        )
        cy = pltpu.make_async_copy(
            y_hbm.at[row_sl, :],
            o_hbm.at[row_sl, pl.ds(lx, ly)],
            sem.at[slot, 1],
        )
        return cx, cy

    # Prologue: kick off row 0's DMAs on the first grid step.
    @pl.when(i == 0)
    def _():
        cx, cy = copies(i, 0)
        cx.start()
        cy.start()

    # Lookahead: start row i+1's DMAs before waiting on row i (double buffer).
    @pl.when(i + 1 < n_rows)
    def _():
        cx, cy = copies(i + 1, (i + 1) % 2)
        cx.start()
        cy.start()

    # Wait for row i's DMAs (started by the previous step or the prologue).
    cx, cy = copies(i, i % 2)
    cx.wait()
    cy.wait()


def concat_layer(x, y, dim=1):
    """Pallas TPU implementation of torch.cat((x, y), dim)."""
    x = jnp.asarray(x)
    y = jnp.asarray(y)
    assert x.ndim == y.ndim, "inputs must have the same rank"
    ndim = x.ndim
    d = dim % ndim  # normalize negative dims
    for ax in range(ndim):
        if ax != d:
            assert x.shape[ax] == y.shape[ax], "non-concat dims must match"

    # torch.cat-style dtype promotion.
    out_dtype = jnp.promote_types(x.dtype, y.dtype)
    x = x.astype(out_dtype)
    y = y.astype(out_dtype)

    out_nd_shape = tuple(
        (x.shape[ax] + y.shape[ax]) if ax == d else x.shape[ax]
        for ax in range(ndim)
    )

    # Flatten to lane-dense 2D rows: for row-major arrays, concat along `d` is,
    # per outer row, one contiguous run of x followed by one contiguous run of y.
    outer = 1
    for ax in range(d):
        outer *= x.shape[ax]
    lx = 1
    ly = 1
    for ax in range(d, ndim):
        lx *= x.shape[ax]
        ly *= y.shape[ax]

    x2 = x.reshape(outer, lx)
    y2 = y.reshape(outer, ly)

    out2 = pl.pallas_call(
        _concat_dma_kernel,
        out_shape=jax.ShapeDtypeStruct((outer, lx + ly), out_dtype),
        grid=(outer,),
        in_specs=[
            pl.BlockSpec(memory_space=pl.ANY),  # x stays in HBM, DMA'd manually
            pl.BlockSpec(memory_space=pl.ANY),  # y stays in HBM
        ],
        out_specs=pl.BlockSpec(memory_space=pl.ANY),  # written via DMA
        scratch_shapes=[pltpu.SemaphoreType.DMA((2, 2))],  # [slot, {x,y}]
        compiler_params=pltpu.CompilerParams(
            # Cross-step DMA lookahead -> this axis must run sequentially.
            dimension_semantics=("arbitrary",),
        ),
    )(x2, y2)

    return out2.reshape(out_nd_shape)


if __name__ == "__main__":
    key = jax.random.PRNGKey(0)
    kx, ky, kz = jax.random.split(key, 3)

    # Primary check: NCHW, channel concat (the module's default dim=1).
    x = jax.random.normal(kx, (2, 4, 16, 16), dtype=jnp.float32)
    y = jax.random.normal(ky, (2, 4, 16, 16), dtype=jnp.float32)
    out = concat_layer(x, y, dim=1)
    out = jax.block_until_ready(out)
    ref = jnp.concatenate((x, y), axis=1)
    assert out.shape == (2, 8, 16, 16)
    assert out.dtype == x.dtype
    assert bool(jnp.array_equal(out, ref))

    # Asymmetric channel counts on the same dim.
    y_big = jax.random.normal(kz, (2, 8, 16, 16), dtype=jnp.float32)
    out2 = concat_layer(x, y_big, dim=1)
    out2 = jax.block_until_ready(out2)
    ref2 = jnp.concatenate((x, y_big), axis=1)
    assert out2.shape == (2, 12, 16, 16)
    assert bool(jnp.array_equal(out2, ref2))

    print("KERNEL_OK")
</pallas_src>

<mosaic_0001>
module attributes {stable_mosaic.version = 11 : i64} {
  func.func @_concat_dma_kernel(%arg0: i32, %arg1: memref<2x1024xf32, #tpu.memory_space<any>>, %arg2: memref<2x1024xf32, #tpu.memory_space<any>>, %arg3: memref<2x2048xf32, #tpu.memory_space<any>>, %arg4: memref<2x2x!tpu.dma_semaphore, #tpu.memory_space<semaphore_mem>>) attributes {dimension_semantics = [#tpu.dimension_semantics<arbitrary>], iteration_bounds = array<i64: 2>, scalar_prefetch = 0 : i64, scratch_operands = 1 : i64, tpu.core_type = #tpu.core_type<tc>, window_params = [{}, {}, {}]} {
    %c0_i32 = arith.constant 0 : i32
    %0 = arith.cmpi eq, %arg0, %c0_i32 : i32
    %1 = arith.extui %0 : i1 to i32
    %c0_i32_0 = arith.constant 0 : i32
    %2 = arith.cmpi ne, %1, %c0_i32_0 : i32
    scf.if %2 {
      %c0_i32_13 = arith.constant 0 : i32
      %c0_i32_14 = arith.constant 0 : i32
      %c0_i32_15 = arith.constant 0 : i32
      %25 = tpu.memref_slice %arg1[%arg0, %c0_i32_15] : memref<2x1024xf32, #tpu.memory_space<any>> -> memref<1x1024xf32, #tpu.memory_space<any>>
      %c0_i32_16 = arith.constant 0 : i32
      %26 = tpu.memref_slice %arg3[%arg0, %c0_i32_16] : memref<2x2048xf32, #tpu.memory_space<any>> -> memref<1x1024xf32, #tpu.memory_space<any>>
      %27 = tpu.memref_slice %arg4[%c0_i32_13, %c0_i32_14] : memref<2x2x!tpu.dma_semaphore, #tpu.memory_space<semaphore_mem>> -> memref<1x1x!tpu.dma_semaphore, #tpu.memory_space<semaphore_mem>>
      %28 = tpu.memref_squeeze %27 : memref<1x1x!tpu.dma_semaphore, #tpu.memory_space<semaphore_mem>> -> memref<!tpu.dma_semaphore, #tpu.memory_space<semaphore_mem>>
      tpu.enqueue_dma source(%25 : memref<1x1024xf32, #tpu.memory_space<any>>) target(%26 : memref<1x1024xf32, #tpu.memory_space<any>>) target_semaphore(%28 : memref<!tpu.dma_semaphore, #tpu.memory_space<semaphore_mem>>)
      %c0_i32_17 = arith.constant 0 : i32
      %c1_i32_18 = arith.constant 1 : i32
      %c0_i32_19 = arith.constant 0 : i32
      %29 = tpu.memref_slice %arg2[%arg0, %c0_i32_19] : memref<2x1024xf32, #tpu.memory_space<any>> -> memref<1x1024xf32, #tpu.memory_space<any>>
      %c1024_i32_20 = arith.constant 1024 : i32
      %30 = tpu.memref_slice %arg3[%arg0, %c1024_i32_20] : memref<2x2048xf32, #tpu.memory_space<any>> -> memref<1x1024xf32, #tpu.memory_space<any>>
      %31 = tpu.memref_slice %arg4[%c0_i32_17, %c1_i32_18] : memref<2x2x!tpu.dma_semaphore, #tpu.memory_space<semaphore_mem>> -> memref<1x1x!tpu.dma_semaphore, #tpu.memory_space<semaphore_mem>>
      %32 = tpu.memref_squeeze %31 : memref<1x1x!tpu.dma_semaphore, #tpu.memory_space<semaphore_mem>> -> memref<!tpu.dma_semaphore, #tpu.memory_space<semaphore_mem>>
      tpu.enqueue_dma source(%29 : memref<1x1024xf32, #tpu.memory_space<any>>) target(%30 : memref<1x1024xf32, #tpu.memory_space<any>>) target_semaphore(%32 : memref<!tpu.dma_semaphore, #tpu.memory_space<semaphore_mem>>)
    } else {
    }
    %c1_i32 = arith.constant 1 : i32
    %3 = arith.addi %arg0, %c1_i32 : i32
    %c2_i32 = arith.constant 2 : i32
    %4 = arith.cmpi slt, %3, %c2_i32 : i32
    %5 = arith.extui %4 : i1 to i32
    %c0_i32_1 = arith.constant 0 : i32
    %6 = arith.cmpi ne, %5, %c0_i32_1 : i32
    scf.if %6 {
      %c1_i32_13 = arith.constant 1 : i32
      %25 = arith.addi %arg0, %c1_i32_13 : i32
      %c1_i32_14 = arith.constant 1 : i32
      %26 = arith.addi %arg0, %c1_i32_14 : i32
      %c2_i32_15 = arith.constant 2 : i32
      %c0_i32_16 = arith.constant 0 : i32
      %27 = arith.cmpi eq, %c2_i32_15, %c0_i32_16 : i32
      %c1_i32_17 = arith.constant 1 : i32
      %28 = arith.select %27, %c1_i32_17, %c2_i32_15 : i32
      %29 = arith.remsi %26, %28 : i32
      %c0_i32_18 = arith.constant 0 : i32
      %30 = arith.cmpi ne, %29, %c0_i32_18 : i32
      %c0_i32_19 = arith.constant 0 : i32
      %31 = arith.cmpi slt, %29, %c0_i32_19 : i32
      %c0_i32_20 = arith.constant 0 : i32
      %32 = arith.cmpi slt, %28, %c0_i32_20 : i32
      %33 = arith.xori %31, %32 : i1
      %34 = arith.andi %33, %30 : i1
      %35 = arith.addi %29, %28 : i32
      %36 = arith.select %34, %35, %29 : i32
      %c0_i32_21 = arith.constant 0 : i32
      %c0_i32_22 = arith.constant 0 : i32
      %37 = tpu.memref_slice %arg1[%25, %c0_i32_22] : memref<2x1024xf32, #tpu.memory_space<any>> -> memref<1x1024xf32, #tpu.memory_space<any>>
      %c0_i32_23 = arith.constant 0 : i32
      %38 = tpu.memref_slice %arg3[%25, %c0_i32_23] : memref<2x2048xf32, #tpu.memory_space<any>> -> memref<1x1024xf32, #tpu.memory_space<any>>
      %39 = tpu.memref_slice %arg4[%36, %c0_i32_21] : memref<2x2x!tpu.dma_semaphore, #tpu.memory_space<semaphore_mem>> -> memref<1x1x!tpu.dma_semaphore, #tpu.memory_space<semaphore_mem>>
      %40 = tpu.memref_squeeze %39 : memref<1x1x!tpu.dma_semaphore, #tpu.memory_space<semaphore_mem>> -> memref<!tpu.dma_semaphore, #tpu.memory_space<semaphore_mem>>
      tpu.enqueue_dma source(%37 : memref<1x1024xf32, #tpu.memory_space<any>>) target(%38 : memref<1x1024xf32, #tpu.memory_space<any>>) target_semaphore(%40 : memref<!tpu.dma_semaphore, #tpu.memory_space<semaphore_mem>>)
      %c1_i32_24 = arith.constant 1 : i32
      %c0_i32_25 = arith.constant 0 : i32
      %41 = tpu.memref_slice %arg2[%25, %c0_i32_25] : memref<2x1024xf32, #tpu.memory_space<any>> -> memref<1x1024xf32, #tpu.memory_space<any>>
      %c1024_i32_26 = arith.constant 1024 : i32
      %42 = tpu.memref_slice %arg3[%25, %c1024_i32_26] : memref<2x2048xf32, #tpu.memory_space<any>> -> memref<1x1024xf32, #tpu.memory_space<any>>
      %43 = tpu.memref_slice %arg4[%36, %c1_i32_24] : memref<2x2x!tpu.dma_semaphore, #tpu.memory_space<semaphore_mem>> -> memref<1x1x!tpu.dma_semaphore, #tpu.memory_space<semaphore_mem>>
      %44 = tpu.memref_squeeze %43 : memref<1x1x!tpu.dma_semaphore, #tpu.memory_space<semaphore_mem>> -> memref<!tpu.dma_semaphore, #tpu.memory_space<semaphore_mem>>
      tpu.enqueue_dma source(%41 : memref<1x1024xf32, #tpu.memory_space<any>>) target(%42 : memref<1x1024xf32, #tpu.memory_space<any>>) target_semaphore(%44 : memref<!tpu.dma_semaphore, #tpu.memory_space<semaphore_mem>>)
    } else {
    }
    %c2_i32_2 = arith.constant 2 : i32
    %c0_i32_3 = arith.constant 0 : i32
    %7 = arith.cmpi eq, %c2_i32_2, %c0_i32_3 : i32
    %c1_i32_4 = arith.constant 1 : i32
    %8 = arith.select %7, %c1_i32_4, %c2_i32_2 : i32
    %9 = arith.remsi %arg0, %8 : i32
    %c0_i32_5 = arith.constant 0 : i32
    %10 = arith.cmpi ne, %9, %c0_i32_5 : i32
    %c0_i32_6 = arith.constant 0 : i32
    %11 = arith.cmpi slt, %9, %c0_i32_6 : i32
    %c0_i32_7 = arith.constant 0 : i32
    %12 = arith.cmpi slt, %8, %c0_i32_7 : i32
    %13 = arith.xori %11, %12 : i1
    %14 = arith.andi %13, %10 : i1
    %15 = arith.addi %9, %8 : i32
    %16 = arith.select %14, %15, %9 : i32
    %c0_i32_8 = arith.constant 0 : i32
    %c0_i32_9 = arith.constant 0 : i32
    %17 = tpu.memref_slice %arg1[%arg0, %c0_i32_9] : memref<2x1024xf32, #tpu.memory_space<any>> -> memref<1x1024xf32, #tpu.memory_space<any>>
    %c0_i32_10 = arith.constant 0 : i32
    %18 = tpu.memref_slice %arg3[%arg0, %c0_i32_10] : memref<2x2048xf32, #tpu.memory_space<any>> -> memref<1x1024xf32, #tpu.memory_space<any>>
    %19 = tpu.memref_slice %arg4[%16, %c0_i32_8] : memref<2x2x!tpu.dma_semaphore, #tpu.memory_space<semaphore_mem>> -> memref<1x1x!tpu.dma_semaphore, #tpu.memory_space<semaphore_mem>>
    %20 = tpu.memref_squeeze %19 : memref<1x1x!tpu.dma_semaphore, #tpu.memory_space<semaphore_mem>> -> memref<!tpu.dma_semaphore, #tpu.memory_space<semaphore_mem>>
    tpu.wait_dma2 semaphore(%20 : memref<!tpu.dma_semaphore, #tpu.memory_space<semaphore_mem>>) src(%17 : memref<1x1024xf32, #tpu.memory_space<any>>) dst(%18 : memref<1x1024xf32, #tpu.memory_space<any>>)
    %c1_i32_11 = arith.constant 1 : i32
    %c0_i32_12 = arith.constant 0 : i32
    %21 = tpu.memref_slice %arg2[%arg0, %c0_i32_12] : memref<2x1024xf32, #tpu.memory_space<any>> -> memref<1x1024xf32, #tpu.memory_space<any>>
    %c1024_i32 = arith.constant 1024 : i32
    %22 = tpu.memref_slice %arg3[%arg0, %c1024_i32] : memref<2x2048xf32, #tpu.memory_space<any>> -> memref<1x1024xf32, #tpu.memory_space<any>>
    %23 = tpu.memref_slice %arg4[%16, %c1_i32_11] : memref<2x2x!tpu.dma_semaphore, #tpu.memory_space<semaphore_mem>> -> memref<1x1x!tpu.dma_semaphore, #tpu.memory_space<semaphore_mem>>
    %24 = tpu.memref_squeeze %23 : memref<1x1x!tpu.dma_semaphore, #tpu.memory_space<semaphore_mem>> -> memref<!tpu.dma_semaphore, #tpu.memory_space<semaphore_mem>>
    tpu.wait_dma2 semaphore(%24 : memref<!tpu.dma_semaphore, #tpu.memory_space<semaphore_mem>>) src(%21 : memref<1x1024xf32, #tpu.memory_space<any>>) dst(%22 : memref<1x1024xf32, #tpu.memory_space<any>>)
    return
  }
}

</mosaic_0001>

<llo_original>
// kernel: tpu_custom_call.1
$region0: #{tpu_custom_call.1}
  #allocation0 [shape = 'u32[]', space=smem, size = 0x4, offset = 0x4, fixed_abs, tag = 'smem constant byte address 0x4 - core index']
  #allocation1 [shape = 'u32[144,128]{1,0:T(1,128)}', space=vmem, size = 0x12000, scoped, tag = 'internal scratch']
  #allocation2 [shape = 's32[4]{0}', space=sflag, size = 0x10, scoped, tag = 'scratch operand']
  #allocation3 [shape = 's32[]', space=sflag, size = 0x4, offset = 0, fixed_abs, tag = 'sflag constant byte address 0x0 - dummy sync flag']
  #allocation5 [shape = 's32[]', space=sflag, size = 0x4, offset = 0, fixed_abs, tag = 'sflag constant byte address 0x0 - dummy sync flag']
  #allocation7 [shape = 's32[]', space=sflag, size = 0x4, offset = 0, fixed_abs, tag = 'sflag constant byte address 0x0 - dummy sync flag']
  #allocation9 [shape = 's32[]', space=sflag, size = 0x4, offset = 0, fixed_abs, tag = 'sflag constant byte address 0x0 - dummy sync flag']
  %s0 = inlined_call_operand.hbm [shape: f32[2,1024], index: 0, kind: input, shape index: {}]
  %s1 = inlined_call_operand.hbm [shape: f32[2,1024], index: 1, kind: input, shape index: {}]
  %s2 = inlined_call_operand.hbm [shape: f32[2,2048], index: 2, kind: output, shape index: {}]
  %s3 = sld [smem:[#allocation0]]
  $region17: #{tpu_custom_call.1} parent=0
    _
  %s5 = ssub.s32 1, %s3
  %s6 = scalar_select 0, %s5, %s3
  loop: start=0, step=1, limit=2
  $region2: #{tpu_custom_call.1} parent=0 // loop_pre_header
    _
  $region3: #{tpu_custom_call.1} parent=0 // loop_header
    %s8 = sphi 0, %s12
    %p9 = scmp.ge.s32.totalorder %s8, 2
  $region4: #{tpu_custom_call.1} parent=0 // loop_header_branch
    %11 = sbr.rel (%p9) target = $region8
  $region5: #{tpu_custom_call.1} parent=0 // loop_body
    %s13 = sadd.s32 %s8, 1
    %p14 = scmp.eq.s32.totalorder %s8, 0
    // Predicated region
    $region9: #{tpu_custom_call.1} parent=5 // pred_check
      %p15 = pneg %p14
    $region10: #{tpu_custom_call.1} parent=5 // pred_check_branch
      %17 = sbr.rel (%p15) target = $region12
    $region11: #{tpu_custom_call.1} parent=5 // pred_region
      #allocation4 [shape = 'u32[3]{0}', space=smem, size = 0xc, scoped, tag = 'DMA stride descriptor']
      #allocation6 [shape = 'u32[3]{0}', space=smem, size = 0xc, scoped, tag = 'DMA stride descriptor']
      %s18 = sshrl.u32 %s8, 1
      %s19 = sand.u32 %s8, 1
      %s20 = smul.u32 %s18, 16
      %s21 = sadd.s32 %s19, %s20
      %s22 = smul.addr %s21, 16
      %s23 = scalar_lea.hbm %s0, %s22
      %s24 = smul.u32 %s18, 32
      %s25 = sadd.s32 %s19, %s24
      %s26 = smul.addr %s25, 16
      %s27 = scalar_lea.hbm %s2, %s26
      %s29 = sshll.u32 1, 14
      %s30 = sxor.u32 4294967295, %s29
      %s33 = sshll.u32 3, 24
      %s34 = sxor.u32 4294967295, %s33
      %s35 = sand.u32 0, %s34
      %s37 = sor.u32 %s35, 0
      %40 = sst [smem:[#allocation4]] 32
      %s41 = scalar_lea.smem [#allocation4], 1
      %42 = sst [smem:[%s41]] 32
      %s43 = scalar_lea.smem [#allocation4], 2
      %44 = sst [smem:[%s43]] 1
      %46 = dma.general %s23, 128, %s27, [#allocation2], [#allocation3], [#allocation4], %s37, 0
      %s47 = smul.addr %s21, 16
      %s48 = scalar_lea.hbm %s1, %s47
      %s49 = sadd.s32 16, %s25
      %s50 = smul.addr %s49, 16
      %s51 = scalar_lea.hbm %s2, %s50
      %s52 = scalar_lea.sflag [#allocation2], 1
      %s54 = sshll.u32 1, 14
      %s55 = sxor.u32 4294967295, %s54
      %s58 = sshll.u32 3, 24
      %s59 = sxor.u32 4294967295, %s58
      %s60 = sand.u32 0, %s59
      %s62 = sor.u32 %s60, 0
      %65 = sst [smem:[#allocation6]] 32
      %s66 = scalar_lea.smem [#allocation6], 1
      %67 = sst [smem:[%s66]] 32
      %s68 = scalar_lea.smem [#allocation6], 2
      %69 = sst [smem:[%s68]] 1
      %71 = dma.general %s48, 128, %s51, %s52, [#allocation5], [#allocation6], %s62, 0
    $region12: #{tpu_custom_call.1} parent=5 // pred_fallthru
      _
    %s72 = sadd.s32 %s8, 1
    %p73 = scmp.lt.s32.totalorder %s72, 2
    // Predicated region
    $region13: #{tpu_custom_call.1} parent=5 // pred_check
      %p74 = pneg %p73
    $region14: #{tpu_custom_call.1} parent=5 // pred_check_branch
      %76 = sbr.rel (%p74) target = $region16
    $region15: #{tpu_custom_call.1} parent=5 // pred_region
      #allocation8 [shape = 'u32[3]{0}', space=smem, size = 0xc, scoped, tag = 'DMA stride descriptor']
      #allocation10 [shape = 'u32[3]{0}', space=smem, size = 0xc, scoped, tag = 'DMA stride descriptor']
      %p77 = scmp.lt.s32.totalorder %s72, 0
      %s78 = ssub.s32 0, %s72
      %s79 = scalar_select %p77, %s78, %s72
      %s80 = sand.u32 %s79, 1
      %s81 = ssub.s32 0, %s80
      %s82 = scalar_select %p77, %s81, %s80
      %p83 = scmp.ne.s32.totalorder %s82, 0
      %p84 = scmp.lt.s32.totalorder %s82, 0
      %p85 = pnand %p84, %p83
      %p86 = pneg %p85
      %s87 = sadd.s32 %s82, 2
      %s88 = scalar_select %p86, %s87, %s82
      %s89 = sshrl.u32 %s72, 1
      %s90 = sand.u32 %s72, 1
      %s91 = smul.u32 %s89, 16
      %s92 = sadd.s32 %s90, %s91
      %s93 = smul.addr %s92, 16
      %s94 = scalar_lea.hbm %s0, %s93
      %s95 = smul.u32 %s89, 32
      %s96 = sadd.s32 %s90, %s95
      %s97 = smul.addr %s96, 16
      %s98 = scalar_lea.hbm %s2, %s97
      %s99 = smul.u32 %s88, 2
      %s100 = scalar_lea.sflag [#allocation2], %s99
      %s102 = sshll.u32 1, 14
      %s103 = sxor.u32 4294967295, %s102
      %s106 = sshll.u32 3, 24
      %s107 = sxor.u32 4294967295, %s106
      %s108 = sand.u32 0, %s107
      %s110 = sor.u32 %s108, 0
      %113 = sst [smem:[#allocation8]] 32
      %s114 = scalar_lea.smem [#allocation8], 1
      %115 = sst [smem:[%s114]] 32
      %s116 = scalar_lea.smem [#allocation8], 2
      %117 = sst [smem:[%s116]] 1
      %119 = dma.general %s94, 128, %s98, %s100, [#allocation7], [#allocation8], %s110, 0
      %s120 = smul.addr %s92, 16
      %s121 = scalar_lea.hbm %s1, %s120
      %s122 = sadd.s32 16, %s96
      %s123 = smul.addr %s122, 16
      %s124 = scalar_lea.hbm %s2, %s123
      %s125 = sadd.s32 1, %s99
      %s126 = scalar_lea.sflag [#allocation2], %s125
      %s128 = sshll.u32 1, 14
      %s129 = sxor.u32 4294967295, %s128
      %s132 = sshll.u32 3, 24
      %s133 = sxor.u32 4294967295, %s132
      %s134 = sand.u32 0, %s133
      %s136 = sor.u32 %s134, 0
      %139 = sst [smem:[#allocation10]] 32
      %s140 = scalar_lea.smem [#allocation10], 1
      %141 = sst [smem:[%s140]] 32
      %s142 = scalar_lea.smem [#allocation10], 2
      %143 = sst [smem:[%s142]] 1
      %145 = dma.general %s121, 128, %s124, %s126, [#allocation9], [#allocation10], %s136, 0
    $region16: #{tpu_custom_call.1} parent=5 // pred_fallthru
      _
    %p146 = scmp.lt.s32.totalorder %s8, 0
    %s147 = ssub.s32 0, %s8
    %s148 = scalar_select %p146, %s147, %s8
    %s149 = sand.u32 %s148, 1
    %s150 = ssub.s32 0, %s149
    %s151 = scalar_select %p146, %s150, %s149
    %p152 = scmp.ne.s32.totalorder %s151, 0
    %p153 = scmp.lt.s32.totalorder %s151, 0
    %p154 = pnand %p153, %p152
    %p155 = pneg %p154
    %s156 = sadd.s32 %s151, 2
    %s157 = scalar_select %p155, %s156, %s151
    %s158 = smul.u32 %s157, 2
    %s159 = scalar_lea.sflag [#allocation2], %s158
    %s160 = smul.u32 1, 8
    %s161 = sshll.u32 %s160, 4
    %162 = dma.done %s159, %s161
    %s163 = sadd.s32 1, %s158
    %s164 = scalar_lea.sflag [#allocation2], %s163
    %s165 = sshll.u32 %s160, 4
    %166 = dma.done %s164, %s165
  $region6: #{tpu_custom_call.1} parent=0 // loop_footer
    %s12 = sadd.s32 1, %s8
  $region7: #{tpu_custom_call.1} parent=0 // loop_footer_branch
    %7 = sbr.rel target = $region3
  $region8: #{tpu_custom_call.1} parent=0 // loop_exit
    _
  %167 = vsyncmov [#allocation2]
  %s168 = vpop.sfrf %167
  %p169 = scmp.eq.s32.totalorder %s168, 0
  %p170 = pneg %p169
  %172 = shalt.err (%p170)
  %s173 = scalar_lea.sflag [#allocation2], 1
  %174 = vsyncmov %s173
  %s175 = vpop.sfrf %174
  %p176 = scmp.eq.s32.totalorder %s175, 0
  %p177 = pneg %p176
  %179 = shalt.err (%p177)
  %s180 = scalar_lea.sflag [#allocation2], 2
  %181 = vsyncmov %s180
  %s182 = vpop.sfrf %181
  %p183 = scmp.eq.s32.totalorder %s182, 0
  %p184 = pneg %p183
  %186 = shalt.err (%p184)
  %s187 = scalar_lea.sflag [#allocation2], 3
  %188 = vsyncmov %s187
  %s189 = vpop.sfrf %188
  %p190 = scmp.eq.s32.totalorder %s189, 0
  %p191 = pneg %p190
  %193 = shalt.err (%p191)

</llo_original>
